<compile_context>
chip_gen: v7x
topology: tpu7x:2x2x1
jax: 0.10.0
libtpu: 0.0.40
codegen_flags: <defaults>
</compile_context>

<pallas_src>
import functools

import jax
import jax.numpy as jnp
from jax.experimental import pallas as pl
from jax.experimental.pallas import tpu as pltpu


_VMEM_LIMIT_BYTES = 32 * 1024 * 1024   # <= ~48 MiB v7x guidance; v5e/v6e could go higher.
_MAX_BLOCK_BYTES = 4 * 1024 * 1024     # per-logits-block cap (double-buffered) - v7x safe.
_NBINS = 256                           # histogram bins over [threshold, 1]; trade-off knob:
                                       # case-B threshold granularity vs VPU cost per pixel.
_NSPLIT = 2                            # per-core partial accumulators for v7x megacore.
_REDUCE_ROWS = 2048                    # reduction block = 2048 x 128 px = 1 MiB per array.


# ----------------------------- Kernel 1: per-pixel CE / gt prob ---------------------------------

def _pixel_kernel(*refs, ignore_label, hw, has_weight, has_sw):
    """Per-pixel cross entropy + softmax prob of the ground-truth class.

    Block layout: logits (1, C, T) with classes on sublanes, pixels on lanes.
    Outputs are lane-dense (1, 1, T) blocks into padded (N, 1, HWP) arrays.
    Ignored pixels and pad pixels (global index >= HW) get loss = 0, prob = +inf.
    """
    idx = 0
    logits_ref = refs[idx]; idx += 1
    labels_ref = refs[idx]; idx += 1
    w_ref = None
    sw_ref = None
    if has_weight:
        w_ref = refs[idx]; idx += 1
    if has_sw:
        sw_ref = refs[idx]; idx += 1
    loss_ref = refs[idx]
    prob_ref = refs[idx + 1]

    x = logits_ref[0].astype(jnp.float32)         # (C, T), cast in-kernel
    lbl = labels_ref[0]                            # (1, T) int32
    c, t = x.shape

    si = pl.program_id(1)
    pix = si * t + jax.lax.broadcasted_iota(jnp.int32, (1, t), 1)
    valid = (lbl != ignore_label) & (pix < hw)     # also masks ragged / padded tail

    # numerically stable softmax pieces (3 class-axis reductions total)
    m = jnp.max(x, axis=0, keepdims=True)          # (1, T)
    ex = jnp.exp(x - m)
    denom = jnp.sum(ex, axis=0, keepdims=True)     # (1, T)

    class_ids = jax.lax.broadcasted_iota(jnp.int32, (c, t), 0)
    onehot = class_ids == lbl                      # (C, T) bool
    gt_logit = jnp.sum(jnp.where(onehot, x, 0.0), axis=0, keepdims=True)

    z = gt_logit - m
    # Exact divide (not approx reciprocal): it runs on the (1, T) reduced row
    # (1/C of the block's work) and keeps `prob < threshold` bit-coherent.
    prob = jnp.exp(z) / denom
    ce = jnp.log(denom) - z                        # -log_softmax[gt]

    if has_weight:
        wcls = w_ref[0].astype(jnp.float32)        # (C, 1) class weights
        wpix = jnp.sum(jnp.where(onehot, wcls, 0.0), axis=0, keepdims=True)
        ce = ce * wpix
    if has_sw:
        ce = ce * sw_ref[0].astype(jnp.float32)    # fold semantic_weights in-kernel

    loss_ref[0] = jnp.where(valid, ce, 0.0)
    prob_ref[0] = jnp.where(valid, prob, jnp.inf)


# ------------------- Kernel 2: fused selection histogram + thresholded sum ----------------------

def _select_reduce_kernel(loss_ref, prob_ref, stat_ref, hcnt_ref, hloss_ref,
                          *, thr0, nbins, tot_rows):
    """One streaming pass over sublane-dense (R, 128) blocks of loss / prob.

    Accumulates into per-core resident output blocks:
      stat rows:  [0] n_valid per lane, [1] count(prob < thr0), [2] sum(loss[prob < thr0])
      hcnt/hloss: nbins-bin histogram (count / loss-sum) of valid probs in [thr0, 1].
    Invalid / padded pixels carry prob = +inf and are excluded; rows beyond the
    real array (clamped out-of-range blocks) are masked by global row index.
    """
    core = pl.program_id(0)
    si = pl.program_id(1)
    inner = pl.num_programs(1)

    @pl.when(si == 0)
    def _():
        stat_ref[...] = jnp.zeros_like(stat_ref)
        hcnt_ref[...] = jnp.zeros_like(hcnt_ref)
        hloss_ref[...] = jnp.zeros_like(hloss_ref)

    prob = prob_ref[...]                           # (R, 128)
    loss = loss_ref[...]                           # (R, 128)
    r = prob.shape[0]

    row0 = (core * inner + si) * r
    g_row = row0 + jax.lax.broadcasted_iota(jnp.int32, prob.shape, 0)
    row_ok = g_row < tot_rows

    valid = (prob <= 1.0) & row_ok                 # invalid / pad pixels have prob = +inf
    keep0 = valid & (prob < thr0)                  # strict '<', as in the torch code

    stat_ref[0:1, :] += jnp.sum(valid.astype(jnp.float32), axis=0, keepdims=True)
    stat_ref[1:2, :] += jnp.sum(keep0.astype(jnp.float32), axis=0, keepdims=True)
    stat_ref[2:3, :] += jnp.sum(jnp.where(keep0, loss, 0.0), axis=0, keepdims=True)

    # Bin index over [thr0, 1]; sentinel `nbins` for anything outside / invalid.
    scale = float(nbins) / max(1.0 - float(thr0), 1e-6)
    scaled = jnp.clip((prob - thr0) * scale, 0.0, nbins - 1)
    bidx = scaled.astype(jnp.int32)
    in_rng = valid & (prob >= thr0)
    bidx = jnp.where(in_rng, bidx, nbins)

    def bin_body(b, carry):
        m = bidx == b
        hcnt_ref[pl.ds(b, 1), :] += jnp.sum(m.astype(jnp.float32), axis=0, keepdims=True)
        hloss_ref[pl.ds(b, 1), :] += jnp.sum(jnp.where(m, loss, 0.0), axis=0, keepdims=True)
        return carry

    jax.lax.fori_loop(0, nbins, bin_body, 0)


# ----------------------------- Module wrapper ----------------------------------------------------

def _pick_tile_hw(hw, n, c, itemsize, tile_pixels):
    """Pixels per kernel-1 grid step: multiple of 128, ~_MAX_BLOCK_BYTES per logits block,
    and >= 2 total grid steps (when possible) so both v7x TensorCores get work."""
    def rup128(v):
        return -(-v // 128) * 128

    max_by_vmem = max(128, _MAX_BLOCK_BYTES // max(1, c * itemsize))
    t = max(128, (min(tile_pixels, max_by_vmem) // 128) * 128)
    t = min(t, rup128(hw))
    if n * (-(-hw // t)) < 2 and t > 128:
        t = max(128, rup128(-(-hw // 2)))
    return t


class OhemCE:
    """Pallas/JAX port of openpifpaf OhemCE forward pass."""

    def __init__(self, ignore_label=-1, threshold=0.7, min_kept=100000, weight=None,
                 tile_pixels=32768):
        self.ignore_label = int(ignore_label)
        self.threshold = float(threshold)
        self.min_kept = max(1, int(min_kept))
        self.weight = weight            # optional (C,) class weights
        self.tile_pixels = int(tile_pixels)

    def __call__(self, logits, labels, semantic_weights=None):
        # logits: (N, C, H, W) float ; labels: (N, H, W) int
        n, c, h, w = logits.shape
        hw = h * w

        # Free reshapes only -- no transpose, no pad, no dtype upcast in the wrapper.
        x3 = logits.reshape(n, c, hw)
        y3 = labels.reshape(n, 1, hw).astype(jnp.int32)

        itemsize = jnp.dtype(logits.dtype).itemsize
        tile_hw = _pick_tile_hw(hw, n, c, itemsize, self.tile_pixels)
        num_sp = -(-hw // tile_hw)
        hwp = num_sp * tile_hw          # padded HW, always a multiple of 128
        grid1 = (n, num_sp)

        has_weight = self.weight is not None
        has_sw = semantic_weights is not None

        in_specs = [pl.BlockSpec((1, c, tile_hw), lambda ni, si: (ni, 0, si)),
                    pl.BlockSpec((1, 1, tile_hw), lambda ni, si: (ni, 0, si))]
        args = [x3, y3]
        if has_weight:
            w3 = jnp.asarray(self.weight, jnp.float32).reshape(1, c, 1)
            in_specs.append(pl.BlockSpec((1, c, 1), lambda ni, si: (0, 0, 0)))
            args.append(w3)
        if has_sw:
            sw3 = jnp.asarray(semantic_weights).reshape(n, 1, hw)
            in_specs.append(pl.BlockSpec((1, 1, tile_hw), lambda ni, si: (ni, 0, si)))
            args.append(sw3)

        loss3, prob3 = pl.pallas_call(
            functools.partial(_pixel_kernel, ignore_label=self.ignore_label, hw=hw,
                              has_weight=has_weight, has_sw=has_sw),
            out_shape=(jax.ShapeDtypeStruct((n, 1, hwp), jnp.float32),
                       jax.ShapeDtypeStruct((n, 1, hwp), jnp.float32)),
            grid=grid1,
            in_specs=in_specs,
            out_specs=[pl.BlockSpec((1, 1, tile_hw), lambda ni, si: (ni, 0, si)),
                       pl.BlockSpec((1, 1, tile_hw), lambda ni, si: (ni, 0, si))],
            compiler_params=pltpu.CompilerParams(
                dimension_semantics=("parallel", "parallel"),
                vmem_limit_bytes=_VMEM_LIMIT_BYTES),
        )(*args)

        # --- fused selection histogram + thresholded sum/count (single pass) ---
        tot_rows = (n * hwp) // 128
        loss2 = loss3.reshape(tot_rows, 128)     # free reshape (contiguous)
        prob2 = prob3.reshape(tot_rows, 128)

        r2 = min(_REDUCE_ROWS, tot_rows)
        tot_blocks = -(-tot_rows // r2)
        inner = -(-tot_blocks // _NSPLIT)

        def in_map(core, s):
            return (jnp.minimum(core * inner + s, tot_blocks - 1), 0)

        stat, hcnt, hloss = pl.pallas_call(
            functools.partial(_select_reduce_kernel, thr0=self.threshold,
                              nbins=_NBINS, tot_rows=tot_rows),
            out_shape=(jax.ShapeDtypeStruct((_NSPLIT * 8, 128), jnp.float32),
                       jax.ShapeDtypeStruct((_NSPLIT * _NBINS, 128), jnp.float32),
                       jax.ShapeDtypeStruct((_NSPLIT * _NBINS, 128), jnp.float32)),
            grid=(_NSPLIT, inner),
            in_specs=[pl.BlockSpec((r2, 128), in_map),
                      pl.BlockSpec((r2, 128), in_map)],
            out_specs=[pl.BlockSpec((8, 128), lambda core, s: (core, 0)),
                       pl.BlockSpec((_NBINS, 128), lambda core, s: (core, 0)),
                       pl.BlockSpec((_NBINS, 128), lambda core, s: (core, 0))],
            compiler_params=pltpu.CompilerParams(
                dimension_semantics=("parallel", "arbitrary"),
                vmem_limit_bytes=_VMEM_LIMIT_BYTES),
        )(loss2, prob2)

        # --- tiny JAX glue on (NBINS,) aggregates (replaces the full jnp.sort) ---
        stat = stat.reshape(_NSPLIT, 8, 128)
        n_valid = jnp.sum(stat[:, 0, :].astype(jnp.int32))
        cnt_fix = jnp.sum(stat[:, 1, :].astype(jnp.int32))
        sum_fix = jnp.sum(stat[:, 2, :])
        hcnt = jnp.sum(hcnt.reshape(_NSPLIT, _NBINS, 128).astype(jnp.int32), axis=(0, 2))
        hloss = jnp.sum(hloss.reshape(_NSPLIT, _NBINS, 128), axis=(0, 2))

        # k-th smallest valid gt-prob; guard n_valid == 0 (result is NaN via 0/0 anyway).
        k = jnp.maximum(jnp.minimum(jnp.int32(self.min_kept), n_valid - 1), 0)
        need = k + 1

        # Case A (exact): at least k+1 valid probs are < threshold  =>  threshold binds.
        # Case B (approx): the k-th prob lies in [threshold, 1]; locate its bin and keep
        # everything strictly below that bin's lower edge.
        # TODO(synk): the exact k-th order statistic (torch .sort()) has no clean streaming
        # Pallas equivalent; case B is bin-granular ((1-threshold)/_NBINS in prob space).
        case_b = cnt_fix < need
        cum = cnt_fix + jnp.cumsum(hcnt)
        bstar = jnp.argmax((cum >= need).astype(jnp.int32))
        below = jnp.arange(_NBINS, dtype=jnp.int32) < bstar
        sum_b = sum_fix + jnp.sum(jnp.where(below, hloss, 0.0))
        cnt_b = cnt_fix + jnp.sum(jnp.where(below, hcnt, 0))

        total_sum = jnp.where(case_b, sum_b, sum_fix)
        total_cnt = jnp.where(case_b, cnt_b, cnt_fix).astype(jnp.float32)

        # Matches torch semantics: NaN if nothing is kept / no valid pixels.
        return (total_sum / total_cnt).astype(jnp.float32)


# ----------------------------- pure-JAX reference (for verification) ----------------------------

def _ohem_reference(logits, labels, ignore_label, threshold, min_kept):
    n, c, h, w = logits.shape
    x = jnp.transpose(logits, (0, 2, 3, 1)).reshape(-1, c).astype(jnp.float32)
    y = labels.reshape(-1).astype(jnp.int32)
    valid = y != ignore_label
    sy = jnp.where(valid, y, 0)
    logp = jax.nn.log_softmax(x, axis=-1)
    ce = -jnp.take_along_axis(logp, sy[:, None], axis=-1)[:, 0]
    loss = jnp.where(valid, ce, 0.0)
    prob = jnp.take_along_axis(jax.nn.softmax(x, axis=-1), sy[:, None], axis=-1)[:, 0]
    n_valid = jnp.sum(valid.astype(jnp.int32))
    sp = jnp.sort(jnp.where(valid, prob, jnp.inf))
    k = jnp.minimum(jnp.int32(min_kept), n_valid - 1)
    thr = jnp.maximum(sp[k], jnp.float32(threshold))
    keep = valid & (prob < thr)
    return jnp.sum(jnp.where(keep, loss, 0.0)) / jnp.sum(keep.astype(jnp.float32))


# ----------------------------- main --------------------------------------------------------------

if __name__ == "__main__":
    key = jax.random.PRNGKey(0)
    k_logits, k_labels = jax.random.split(key)

    N, C, H, W = 2, 4, 16, 16
    logits = jax.random.normal(k_logits, (N, C, H, W), dtype=jnp.float32) * 2.0
    # labels in {-1, 0, 1, 2, 3}; -1 is the ignore label
    labels = jax.random.randint(k_labels, (N, H, W), minval=-1, maxval=C, dtype=jnp.int32)

    ohem = OhemCE(ignore_label=-1, threshold=0.7, min_kept=100)
    out = jax.block_until_ready(ohem(logits, labels))

    ref = jax.block_until_ready(
        _ohem_reference(logits, labels, ignore_label=-1, threshold=0.7, min_kept=100))

    if not jnp.allclose(out, ref, atol=1e-4, rtol=1e-4):
        raise AssertionError(f"mismatch: pallas={out} ref={ref}")

    print("KERNEL_OK")
</pallas_src>

<mosaic_0001>
module attributes {stable_mosaic.version = 11 : i64} {
  func.func @_pixel_kernel(%arg0: i32, %arg1: i32, %arg2: memref<1x4x256xf32, #tpu.memory_space<vmem>>, %arg3: memref<1x1x256xi32, #tpu.memory_space<vmem>>, %arg4: memref<1x1x256xf32, #tpu.memory_space<vmem>>, %arg5: memref<1x1x256xf32, #tpu.memory_space<vmem>>) attributes {dimension_semantics = [#tpu.dimension_semantics<parallel>, #tpu.dimension_semantics<parallel>], iteration_bounds = array<i64: 2, 1>, scalar_prefetch = 0 : i64, scratch_operands = 0 : i64, tpu.core_type = #tpu.core_type<tc>, window_params = [{transform_indices = @transform_0, window_bounds = array<i64: 1, 4, 256>}, {transform_indices = @transform_1, window_bounds = array<i64: 1, 1, 256>}, {transform_indices = @transform_2, window_bounds = array<i64: 1, 1, 256>}, {transform_indices = @transform_3, window_bounds = array<i64: 1, 1, 256>}]} {
    %c0 = arith.constant 0 : index
    %c0_0 = arith.constant 0 : index
    %c0_1 = arith.constant 0 : index
    %0 = vector.load %arg2[%c0, %c0_0, %c0_1] : memref<1x4x256xf32, #tpu.memory_space<vmem>>, vector<1x4x256xf32>
    %1 = vector.shape_cast %0 : vector<1x4x256xf32> to vector<4x256xf32>
    %c0_2 = arith.constant 0 : index
    %c0_3 = arith.constant 0 : index
    %c0_4 = arith.constant 0 : index
    %2 = vector.load %arg3[%c0_2, %c0_3, %c0_4] : memref<1x1x256xi32, #tpu.memory_space<vmem>>, vector<1x1x256xi32>
    %3 = vector.shape_cast %2 : vector<1x1x256xi32> to vector<1x256xi32>
    %c256_i32 = arith.constant 256 : i32
    %4 = arith.muli %arg1, %c256_i32 : i32
    %5 = tpu.iota {dimensions = array<i32: 1>} : vector<1x256xi32>
    %6 = vector.broadcast %4 : i32 to vector<1x256xi32>
    %7 = arith.addi %6, %5 : vector<1x256xi32>
    %c-1_i32 = arith.constant -1 : i32
    %8 = vector.broadcast %c-1_i32 : i32 to vector<1x256xi32>
    %9 = arith.cmpi ne, %3, %8 : vector<1x256xi32>
    %c256_i32_5 = arith.constant 256 : i32
    %10 = vector.broadcast %c256_i32_5 : i32 to vector<1x256xi32>
    %11 = arith.cmpi slt, %7, %10 : vector<1x256xi32>
    %12 = arith.andi %9, %11 : vector<1x256xi1>
    %cst = arith.constant dense<0xFF800000> : vector<256xf32>
    %13 = vector.multi_reduction <maximumf>, %1, %cst [0] : vector<4x256xf32> to vector<256xf32>
    %14 = vector.shape_cast %13 : vector<256xf32> to vector<1x256xf32>
    %15 = vector.broadcast %14 : vector<1x256xf32> to vector<4x256xf32>
    %16 = arith.subf %1, %15 : vector<4x256xf32>
    %17 = math.exp %16 : vector<4x256xf32>
    %cst_6 = arith.constant dense<0.000000e+00> : vector<256xf32>
    %18 = vector.multi_reduction <add>, %17, %cst_6 [0] : vector<4x256xf32> to vector<256xf32>
    %19 = vector.shape_cast %18 : vector<256xf32> to vector<1x256xf32>
    %20 = tpu.iota {dimensions = array<i32: 0>} : vector<4x256xi32>
    %21 = vector.broadcast %3 : vector<1x256xi32> to vector<4x256xi32>
    %22 = arith.cmpi eq, %20, %21 : vector<4x256xi32>
    %cst_7 = arith.constant 0.000000e+00 : f32
    %23 = vector.broadcast %cst_7 : f32 to vector<4x256xf32>
    %24 = arith.select %22, %1, %23 : vector<4x256xi1>, vector<4x256xf32>
    %cst_8 = arith.constant dense<0.000000e+00> : vector<256xf32>
    %25 = vector.multi_reduction <add>, %24, %cst_8 [0] : vector<4x256xf32> to vector<256xf32>
    %26 = vector.shape_cast %25 : vector<256xf32> to vector<1x256xf32>
    %27 = arith.subf %26, %14 : vector<1x256xf32>
    %28 = math.exp %27 : vector<1x256xf32>
    %29 = arith.divf %28, %19 : vector<1x256xf32>
    %30 = math.log %19 : vector<1x256xf32>
    %31 = arith.subf %30, %27 : vector<1x256xf32>
    %cst_9 = arith.constant 0.000000e+00 : f32
    %32 = vector.broadcast %cst_9 : f32 to vector<1x256xf32>
    %33 = arith.select %12, %31, %32 : vector<1x256xi1>, vector<1x256xf32>
    %c0_10 = arith.constant 0 : index
    %c0_11 = arith.constant 0 : index
    %c0_12 = arith.constant 0 : index
    %34 = vector.load %arg4[%c0_10, %c0_11, %c0_12] : memref<1x1x256xf32, #tpu.memory_space<vmem>>, vector<1x1x256xf32>
    %35 = vector.shape_cast %34 : vector<1x1x256xf32> to vector<1x256xf32>
    %36 = vector.shape_cast %33 : vector<1x256xf32> to vector<1x1x256xf32>
    tpu.vector_store %arg4[%c0_10, %c0_11, %c0_12], %36 {strides = array<i32>} : memref<1x1x256xf32, #tpu.memory_space<vmem>>, vector<1x1x256xf32>,
    %cst_13 = arith.constant 0x7F800000 : f32
    %37 = vector.broadcast %cst_13 : f32 to vector<1x256xf32>
    %38 = arith.select %12, %29, %37 : vector<1x256xi1>, vector<1x256xf32>
    %c0_14 = arith.constant 0 : index
    %c0_15 = arith.constant 0 : index
    %c0_16 = arith.constant 0 : index
    %39 = vector.load %arg5[%c0_14, %c0_15, %c0_16] : memref<1x1x256xf32, #tpu.memory_space<vmem>>, vector<1x1x256xf32>
    %40 = vector.shape_cast %39 : vector<1x1x256xf32> to vector<1x256xf32>
    %41 = vector.shape_cast %38 : vector<1x256xf32> to vector<1x1x256xf32>
    tpu.vector_store %arg5[%c0_14, %c0_15, %c0_16], %41 {strides = array<i32>} : memref<1x1x256xf32, #tpu.memory_space<vmem>>, vector<1x1x256xf32>,
    return
  }
  func.func @transform_0(%arg0: i32, %arg1: i32) -> (i32, i32, i32) {
    %c0_i32 = arith.constant 0 : i32
    %c0_i32_0 = arith.constant 0 : i32
    return %arg0, %c0_i32, %arg1 : i32, i32, i32
  }
  func.func @transform_1(%arg0: i32, %arg1: i32) -> (i32, i32, i32) {
    %c0_i32 = arith.constant 0 : i32
    %c0_i32_0 = arith.constant 0 : i32
    return %arg0, %c0_i32, %arg1 : i32, i32, i32
  }
  func.func @transform_2(%arg0: i32, %arg1: i32) -> (i32, i32, i32) {
    %c0_i32 = arith.constant 0 : i32
    %c0_i32_0 = arith.constant 0 : i32
    return %arg0, %c0_i32, %arg1 : i32, i32, i32
  }
  func.func @transform_3(%arg0: i32, %arg1: i32) -> (i32, i32, i32) {
    %c0_i32 = arith.constant 0 : i32
    %c0_i32_0 = arith.constant 0 : i32
    return %arg0, %c0_i32, %arg1 : i32, i32, i32
  }
}

</mosaic_0001>

<llo_original>
// kernel: tpu_custom_call.1
$region0: #{tpu_custom_call.1}
  #allocation0 [shape = 'u32[]', space=smem, size = 0x4, offset = 0x4, fixed_abs, tag = 'smem constant byte address 0x4 - core index']
  #allocation1 [shape = 'u32[144,128]{1,0:T(1,128)}', space=vmem, size = 0x12000, scoped, tag = 'internal scratch']
  %s0 = inlined_call_operand.hbm [shape: f32[2,4,256], index: 0, kind: input, shape index: {}]
  %s1 = inlined_call_operand.hbm [shape: s32[2,1,256], index: 1, kind: input, shape index: {}]
  %s2 = inlined_call_operand.hbm [shape: f32[2,1,256], index: 2, kind: output, shape index: {0}]
  %s3 = inlined_call_operand.hbm [shape: f32[2,1,256], index: 3, kind: output, shape index: {1}]
  %4 = xla_tuple %s2, %s3
  %s5 = sld [smem:[#allocation0]]
  $region57: #{tpu_custom_call.1} parent=0
    _
  %s7 = ssub.s32 1, %s5
  %s8 = scalar_select 0, %s7, %s5
  $region1: #{tpu_custom_call.1} parent=0
    #allocation2 [shape = 'u8[8192]{0}', space=vmem, size = 0x2000, scoped, tag = 'input window, operand 0']
    #allocation3 [shape = 's32[2]{0}', space=sflag, size = 0x8, scoped, tag = 'scoped memory for tpu_custom_call.1']
    #allocation4 [shape = 's32[2]{0}', space=sflag, size = 0x8, scoped, tag = 'scoped memory for tpu_custom_call.1']
    #allocation5 [shape = 'u8[2048]{0}', space=vmem, size = 0x800, scoped, tag = 'input window, operand 1']
    #allocation6 [shape = 's32[2]{0}', space=sflag, size = 0x8, scoped, tag = 'scoped memory for tpu_custom_call.1']
    #allocation7 [shape = 'u8[2048]{0}', space=vmem, size = 0x800, scoped, tag = 'output window, operand 0']
    #allocation8 [shape = 'u8[2048]{0}', space=vmem, size = 0x800, scoped, tag = 'output window, operand 1']
    #allocation9 [shape = 's32[2]{0}', space=sflag, size = 0x8, scoped, tag = 'scoped memory for tpu_custom_call.1']
    %9 = vsyncpa [#allocation3], 0
    %s10 = scalar_lea.sflag [#allocation3], 1
    %11 = vsyncpa %s10, 0
    %12 = vsyncpa [#allocation6], 0
    %s13 = scalar_lea.sflag [#allocation6], 1
    %14 = vsyncpa %s13, 0
    %15 = vsyncpa [#allocation4], 0
    %s16 = scalar_lea.sflag [#allocation4], 1
    %17 = vsyncpa %s16, 0
    %18 = vsyncpa [#allocation9], 0
    %s19 = scalar_lea.sflag [#allocation9], 1
    %20 = vsyncpa %s19, 0
    loop: start=0, step=1, limit=4
    $region2: #{tpu_custom_call.1} parent=1 // loop_pre_header
      _
    $region3: #{tpu_custom_call.1} parent=1 // loop_header
      %s22 = sphi 0, %s26
      %p23 = scmp.ge.s32.totalorder %s22, 4
      %s29 = sphi 0, %s41
      %s30 = sphi 0, %s37
      %s31 = sphi 0, %s29
      %s32 = sphi 0, %s30
      %s33 = sphi 0, %s31
      %s34 = sphi 0, %s32
      %s46 = sphi 0, %s48
      %s49 = sphi 0, %s46
      %s50 = sphi 0, %s49
      %s66 = sphi 0, %s50
      %s74 = sphi 0, %s76
      %s77 = sphi 0, %s74
      %s78 = sphi 0, %s77
      %s94 = sphi 0, %s78
      %s102 = sphi 0, %s104
      %s105 = sphi 0, %s102
      %s106 = sphi 0, %s105
      %s122 = sphi 0, %s106
      %s130 = sphi 0, %s132
      %s133 = sphi 0, %s130
      %s134 = sphi 0, %s133
      %s150 = sphi 0, %s134
    $region4: #{tpu_custom_call.1} parent=1 // loop_header_branch
      %25 = sbr.rel (%p23) target = $region8
    $region5: #{tpu_custom_call.1} parent=1 // loop_body
      %s27 = ssub.s32 %s22, 1
      %s28 = ssub.s32 %s22, 2
      %s35 = sadd.s32 1, %s30
      %p36 = scmp.ge.s32.totalorder %s35, 1
      %s37 = scalar_select %p36, 0, %s35
      %s38 = sadd.s32 1, %s29
      %s39 = scalar_select %p36, %s38, %s29
      %p40 = scmp.ge.s32.totalorder %s39, 2
      %s41 = scalar_select %p40, 0, %s39
      %s42 = ssub.s32 %s29, %s41
      %s43 = ssub.s32 %s30, %s37
      %s44 = sor.u32 %s42, %s43
      %p45 = scmp.eq.s32.totalorder %s44, 0
      %s47 = sadd.s32 %s46, 1
      %s48 = scalar_select %p45, %s46, %s47
      %p51 = pneg %p45
      %p52 = scmp.eq.s32.totalorder %s22, 1
      %p53 = por %p51, %p52
      %p54 = scmp.ne.s32.totalorder %s46, %s49
      %p55 = scmp.eq.s32.totalorder %s22, 0
      %p56 = por %p54, %p55
      %p57 = scmp.ne.s32.totalorder %s46, %s49
      %p58 = scmp.eq.s32.totalorder %s27, 1
      %p59 = por %p57, %p58
      %p60 = scmp.ne.s32.totalorder %s49, %s50
      %p61 = scmp.eq.s32.totalorder %s27, 0
      %p62 = por %p60, %p61
      %p63 = scmp.ne.s32.totalorder %s49, %s50
      %p64 = scmp.eq.s32.totalorder %s28, 1
      %p65 = por %p63, %p64
      %p67 = scmp.ne.s32.totalorder %s50, %s66
      %p68 = scmp.eq.s32.totalorder %s28, 0
      %p69 = por %p67, %p68
      %s70 = ssub.s32 %s29, %s41
      %s71 = ssub.s32 %s30, %s37
      %s72 = sor.u32 %s70, %s71
      %p73 = scmp.eq.s32.totalorder %s72, 0
      %s75 = sadd.s32 %s74, 1
      %s76 = scalar_select %p73, %s74, %s75
      %p79 = pneg %p73
      %p80 = scmp.eq.s32.totalorder %s22, 1
      %p81 = por %p79, %p80
      %p82 = scmp.ne.s32.totalorder %s74, %s77
      %p83 = scmp.eq.s32.totalorder %s22, 0
      %p84 = por %p82, %p83
      %p85 = scmp.ne.s32.totalorder %s74, %s77
      %p86 = scmp.eq.s32.totalorder %s27, 1
      %p87 = por %p85, %p86
      %p88 = scmp.ne.s32.totalorder %s77, %s78
      %p89 = scmp.eq.s32.totalorder %s27, 0
      %p90 = por %p88, %p89
      %p91 = scmp.ne.s32.totalorder %s77, %s78
      %p92 = scmp.eq.s32.totalorder %s28, 1
      %p93 = por %p91, %p92
      %p95 = scmp.ne.s32.totalorder %s78, %s94
      %p96 = scmp.eq.s32.totalorder %s28, 0
      %p97 = por %p95, %p96
      %s98 = ssub.s32 %s29, %s41
      %s99 = ssub.s32 %s30, %s37
      %s100 = sor.u32 %s98, %s99
      %p101 = scmp.eq.s32.totalorder %s100, 0
      %s103 = sadd.s32 %s102, 1
      %s104 = scalar_select %p101, %s102, %s103
      %p107 = pneg %p101
      %p108 = scmp.eq.s32.totalorder %s22, 1
      %p109 = por %p107, %p108
      %p110 = scmp.ne.s32.totalorder %s102, %s105
      %p111 = scmp.eq.s32.totalorder %s22, 0
      %p112 = por %p110, %p111
      %p113 = scmp.ne.s32.totalorder %s102, %s105
      %p114 = scmp.eq.s32.totalorder %s27, 1
      %p115 = por %p113, %p114
      %p116 = scmp.ne.s32.totalorder %s105, %s106
      %p117 = scmp.eq.s32.totalorder %s27, 0
      %p118 = por %p116, %p117
      %p119 = scmp.ne.s32.totalorder %s105, %s106
      %p120 = scmp.eq.s32.totalorder %s28, 1
      %p121 = por %p119, %p120
      %p123 = scmp.ne.s32.totalorder %s106, %s122
      %p124 = scmp.eq.s32.totalorder %s28, 0
      %p125 = por %p123, %p124
      %s126 = ssub.s32 %s29, %s41
      %s127 = ssub.s32 %s30, %s37
      %s128 = sor.u32 %s126, %s127
      %p129 = scmp.eq.s32.totalorder %s128, 0
      %s131 = sadd.s32 %s130, 1
      %s132 = scalar_select %p129, %s130, %s131
      %p135 = pneg %p129
      %p136 = scmp.eq.s32.totalorder %s22, 1
      %p137 = por %p135, %p136
      %p138 = scmp.ne.s32.totalorder %s130, %s133
      %p139 = scmp.eq.s32.totalorder %s22, 0
      %p140 = por %p138, %p139
      %p141 = scmp.ne.s32.totalorder %s130, %s133
      %p142 = scmp.eq.s32.totalorder %s27, 1
      %p143 = por %p141, %p142
      %p144 = scmp.ne.s32.totalorder %s133, %s134
      %p145 = scmp.eq.s32.totalorder %s27, 0
      %p146 = por %p144, %p145
      %p147 = scmp.ne.s32.totalorder %s133, %s134
      %p148 = scmp.eq.s32.totalorder %s28, 1
      %p149 = por %p147, %p148
      %p151 = scmp.ne.s32.totalorder %s134, %s150
      %p152 = scmp.eq.s32.totalorder %s28, 0
      %p153 = por %p151, %p152
      %p154 = scmp.le.s32.totalorder 1, %s22
      %p155 = scmp.lt.s32.totalorder %s22, 3
      %p156 = pnand %p154, %p155
      %p157 = pneg %p156
      // Predicated region
      $region9: #{tpu_custom_call.1} parent=5 // pred_check
        _
      $region10: #{tpu_custom_call.1} parent=5 // pred_check_branch
        %159 = sbr.rel (%p156) target = $region12
      $region11: #{tpu_custom_call.1} parent=5 // pred_region
        %s160 = ssub.s32 %s22, 1
      $region12: #{tpu_custom_call.1} parent=5 // pred_fallthru
        _
      %p161 = scmp.lt.s32.totalorder %s22, 2
      // Predicated region
      $region13: #{tpu_custom_call.1} parent=5 // pred_check
        %p162 = pneg %p161
      $region14: #{tpu_custom_call.1} parent=5 // pred_check_branch
        %164 = sbr.rel (%p162) target = $region16
      $region15: #{tpu_custom_call.1} parent=5 // pred_region
        // Predicated region
        $region17: #{tpu_custom_call.1} parent=15 // pred_check
          %p165 = pneg %p56
        $region18: #{tpu_custom_call.1} parent=15 // pred_check_branch
          %167 = sbr.rel (%p165) target = $region20
        $region19: #{tpu_custom_call.1} parent=15 // pred_region
          %s168 = sand.u32 %s46, 1
          %s169 = scalar_lea.sflag [#allocation3], %s168
          %s170 = sand.u32 %s46, 1
          %s171 = smul.addr %s170, 8
          %s172 = scalar_lea.vmem [#allocation2], %s171
          %s173 = smul.u32 2, %s30
          %s175 = ssub.s32 128, 128
          %176 = vsyncadd %s169, %s175
          %s177 = smul.addr %s29, 2
          %s178 = sadd.s32 %s173, %s177
          %s179 = smul.addr %s178, 64
          %s180 = scalar_lea.hbm %s0, %s179
          %s182 = sshll.u32 %s172, 4
          %s183 = int_to_ptr.vmem [resolvable:$true] %s182
          %185 = dma.hbm_to_vmem [thread:$0]  %s180, 128, %s183, %s169
        $region20: #{tpu_custom_call.1} parent=15 // pred_fallthru
          _
        // Predicated region
        $region21: #{tpu_custom_call.1} parent=15 // pred_check
          %p186 = pneg %p84
        $region22: #{tpu_custom_call.1} parent=15 // pred_check_branch
          %188 = sbr.rel (%p186) target = $region24
        $region23: #{tpu_custom_call.1} parent=15 // pred_region
          %s189 = sand.u32 %s74, 1
          %s190 = scalar_lea.sflag [#allocation6], %s189
          %s191 = sand.u32 %s74, 1
          %s192 = smul.addr %s191, 2
          %s193 = scalar_lea.vmem [#allocation5], %s192
          %s194 = smul.u32 2, %s30
          %s196 = ssub.s32 32, 32
          %197 = vsyncadd %s190, %s196
          %s198 = smul.addr %s29, 2
          %s199 = sadd.s32 %s194, %s198
          %s200 = smul.addr %s199, 16
          %s201 = scalar_lea.hbm %s1, %s200
          %s203 = sshll.u32 %s193, 4
          %s204 = int_to_ptr.vmem [resolvable:$true] %s203
          %206 = dma.hbm_to_vmem [thread:$0]  %s201, 32, %s204, %s190
        $region24: #{tpu_custom_call.1} parent=15 // pred_fallthru
          _
      $region16: #{tpu_custom_call.1} parent=5 // pred_fallthru
        _
      %p207 = scmp.le.s32.totalorder 1, %s22
      %p208 = scmp.lt.s32.totalorder %s22, 3
      %p209 = pnand %p207, %p208
      %p210 = pneg %p209
      // Predicated region
      $region25: #{tpu_custom_call.1} parent=5 // pred_check
        _
      $region26: #{tpu_custom_call.1} parent=5 // pred_check_branch
        %212 = sbr.rel (%p209) target = $region28
      $region27: #{tpu_custom_call.1} parent=5 // pred_region
        %s213 = ssub.s32 %s22, 1
        %s214 = sand.u32 %s49, 1
        %s215 = scalar_lea.sflag [#allocation3], %s214
        %s216 = sand.u32 %s49, 1
        %s217 = smul.addr %s216, 8
        %s218 = scalar_lea.vmem [#allocation2], %s217
        // Predicated region
        $region29: #{tpu_custom_call.1} parent=27 // pred_check
          %p219 = pneg %p62
        $region30: #{tpu_custom_call.1} parent=27 // pred_check_branch
          %221 = sbr.rel (%p219) target = $region32
        $region31: #{tpu_custom_call.1} parent=27 // pred_region
          %222 = dma.done %s215, 128
        $region32: #{tpu_custom_call.1} parent=27 // pred_fallthru
          _
        %s223 = sand.u32 %s77, 1
        %s224 = scalar_lea.sflag [#allocation6], %s223
        %s225 = sand.u32 %s77, 1
        %s226 = smul.addr %s225, 2
        %s227 = scalar_lea.vmem [#allocation5], %s226
        // Predicated region
        $region33: #{tpu_custom_call.1} parent=27 // pred_check
          %p228 = pneg %p90
        $region34: #{tpu_custom_call.1} parent=27 // pred_check_branch
          %230 = sbr.rel (%p228) target = $region36
        $region35: #{tpu_custom_call.1} parent=27 // pred_region
          %231 = dma.done %s224, 32
        $region36: #{tpu_custom_call.1} parent=27 // pred_fallthru
          _
        %s232 = sand.u32 %s49, 1
        %s233 = scalar_lea.sflag [#allocation3], %s232
        %s234 = sand.u32 %s49, 1
        %s235 = smul.addr %s234, 8
        %s236 = scalar_lea.vmem [#allocation2], %s235
        %p237 = pneg %p62
        %p238 = pneg %p59
        %s239 = sand.u32 %s77, 1
        %s240 = scalar_lea.sflag [#allocation6], %s239
        %s241 = sand.u32 %s77, 1
        %s242 = smul.addr %s241, 2
        %s243 = scalar_lea.vmem [#allocation5], %s242
        %p244 = pneg %p90
        %p245 = pneg %p87
        %p246 = pneg %p118
        %p247 = pneg %p115
        %s248 = sand.u32 %s105, 1
        %s249 = scalar_lea.sflag [#allocation4], %s248
        %s250 = sand.u32 %s105, 1
        %s251 = smul.addr %s250, 2
        %s252 = scalar_lea.vmem [#allocation7], %s251
        %p253 = pneg %p146
        %p254 = pneg %p143
        %s255 = sand.u32 %s133, 1
        %s256 = scalar_lea.sflag [#allocation9], %s255
        %s257 = sand.u32 %s133, 1
        %s258 = smul.addr %s257, 2
        %s259 = scalar_lea.vmem [#allocation8], %s258
        %s260 = smul.u32 2, %s32
        %s261 = smul.u32 2, %s32
        %s262 = smul.u32 2, %s32
        %s263 = smul.u32 2, %s32
        %v264 = vld [vmem:[%s218] sm:$0xff]
        %v265 = vld [vmem:[%s227] sm:$0x3]
        %s266 = smul.u32 %s32, 256
        %v267 = vlaneseq
        %v268 = vand.u32 %v267, 127
        %v269 = vadd.s32 %v268, 128
        %v270 = vstv %s266
        %v271 = vadd.s32 %v270, %v268
        %v272 = vadd.s32 %v270, %v269
        %vm273 = vcmp.ne.s32.totalorder %v265, 4294967295
        %vm274 = vcmp.lt.s32.totalorder %v271, 256
        %vm275 = vcmp.lt.s32.totalorder %v272, 256
        %v276 = vsel %vm274, 1, 0
        %v277 = vsel %vm275, 1, 0
        %v278 = vcombine.low %v276, %v277
        %v280 = vunpack.c.l.s4 1966171168
        %v281 = vunpack.c.0.s8 %v280
        %v282 = vlaneseq
        %v283 = vshrl.u32 %v282, 7
        %v284 = vsub.s32 %v281, %v283
        %v285 = vrot.slane %v278, %v284
        %v287 = vunpack.c.l.s4 1966171168
        %v288 = vunpack.c.0.s8 %v287
        %v289 = vlaneseq
        %v290 = vshrl.u32 %v289, 7
        %v291 = vsub.s32 %v288, %v290
        %v292 = vrot.slane %v285, %v291
        %vm293 = vcmp.ne.s32.totalorder %v292, 0
        %vm294 = vmand %vm273, %vm293
        %v296 = vcombine.high %v264, %v264
        %vm298 = vcmask 1043456
        %v299 = vsel %vm298, %v264, -inf
        %v300 = vrot.slane %v299, 4
        %v301 = vmax.f32 %v299, %v300
        %v302 = vrot.slane %v301, 2
        %v303 = vmax.f32 %v301, %v302
        %v304 = vrot.slane %v303, 1
        %v305 = vmax.f32 %v303, %v304
        %v306 = vsel %vm298, %v296, -inf
        %v307 = vrot.slane %v306, 4
        %v308 = vmax.f32 %v306, %v307
        %v309 = vrot.slane %v308, 2
        %v310 = vmax.f32 %v308, %v309
        %v311 = vrot.slane %v310, 1
        %v312 = vmax.f32 %v310, %v311
        %v315 = vcombine.low %v305, %v312
        %v317 = vsub.f32 %v264, %v315
        %v318 = vmul.f32 %v317, 1.442695
        %v319 = vpow.pop %v318
        %v321 = vcombine.high %v319, %v319
        %v323 = vsel %vm298, %v319, 0.0
        %v324 = vrot.slane %v323, 4
        %v325 = vadd.f32 %v323, %v324
        %v326 = vrot.slane %v325, 2
        %v327 = vadd.f32 %v325, %v326
        %v328 = vrot.slane %v327, 1
        %v329 = vadd.f32 %v327, %v328
        %v330 = vsel %vm298, %v321, 0.0
        %v331 = vrot.slane %v330, 4
        %v332 = vadd.f32 %v330, %v331
        %v333 = vrot.slane %v332, 2
        %v334 = vadd.f32 %v332, %v333
        %v335 = vrot.slane %v334, 1
        %v336 = vadd.f32 %v334, %v335
        %v337 = vlaneseq
        %v338 = vshrl.u32 %v337, 7
        %v339 = vlaneseq
        %v340 = vshrl.u32 %v339, 7
        %v341 = vsub.s32 0, %v340
        %v342 = vrot.slane %v265, %v341
        %v343 = vlaneseq
        %v344 = vshrl.u32 %v343, 7
        %v345 = vsub.s32 1, %v344
        %v346 = vrot.slane %v265, %v345
        %vm347 = vcmp.eq.s32.totalorder %v338, %v342
        %vm348 = vcmp.eq.s32.totalorder %v338, %v346
        %v349 = vsel %vm347, %v264, 0.0
        %v350 = vsel %vm348, %v296, 0.0
        %v351 = vsel %vm298, %v349, 0.0
        %v352 = vrot.slane %v351, 4
        %v353 = vadd.f32 %v351, %v352
        %v354 = vrot.slane %v353, 2
        %v355 = vadd.f32 %v353, %v354
        %v356 = vrot.slane %v355, 1
        %v357 = vadd.f32 %v355, %v356
        %v358 = vsel %vm298, %v350, 0.0
        %v359 = vrot.slane %v358, 4
        %v360 = vadd.f32 %v358, %v359
        %v361 = vrot.slane %v360, 2
        %v362 = vadd.f32 %v360, %v361
        %v363 = vrot.slane %v362, 1
        %v364 = vadd.f32 %v362, %v363
        %v365 = vsub.f32 %v357, %v305
        %v366 = vsub.f32 %v364, %v312
        %v367 = vmul.f32 %v365, 1.442695
        %v368 = vpow.pop %v367
        %v369 = vmul.f32 %v366, 1.442695
        %v370 = vpow.pop %v369
        %v371 = vrcp.pop %v329
        %v372 = vmul.f32 %v368, %v371
        %v373 = vrcp.pop %v336
        %v374 = vmul.f32 %v370, %v373
        %v375 = vlog2.pop %v329
        %v376 = vmul.f32 %v375, 0.6931472
        %v377 = vlog2.pop %v336
        %v378 = vmul.f32 %v377, 0.6931472
        %v379 = vsub.f32 %v376, %v365
        %v380 = vsub.f32 %v378, %v366
        %v383 = vcombine.low %v379, %v380
        %v385 = vunpack.c.l.s4 1966171168
        %v386 = vunpack.c.0.s8 %v385
        %v387 = vlaneseq
        %v388 = vshrl.u32 %v387, 7
        %v389 = vsub.s32 %v386, %v388
        %v390 = vrot.slane %v383, %v389
        %v392 = vunpack.c.l.s4 1966171168
        %v393 = vunpack.c.0.s8 %v392
        %v394 = vlaneseq
        %v395 = vshrl.u32 %v394, 7
        %v396 = vsub.s32 %v393, %v395
        %v397 = vrot.slane %v390, %v396
        %v399 = vsel %vm294, %v397, 0.0
        %v400 = vlaneseq
        %vm401 = vcmp.ge.s32.totalorder %v400, 0
        %vm402 = vcmp.lt.s32.totalorder %v400, 256
        %vm403 = vmand %vm401, %vm402
        %404 = vst.msk [vmem:[%s252] sm:$0x3] %vm403, %v399
        %v407 = vcombine.low %v372, %v374
        %v409 = vunpack.c.l.s4 1966171168
        %v410 = vunpack.c.0.s8 %v409
        %v411 = vlaneseq
        %v412 = vshrl.u32 %v411, 7
        %v413 = vsub.s32 %v410, %v412
        %v414 = vrot.slane %v407, %v413
        %v416 = vunpack.c.l.s4 1966171168
        %v417 = vunpack.c.0.s8 %v416
        %v418 = vlaneseq
        %v419 = vshrl.u32 %v418, 7
        %v420 = vsub.s32 %v417, %v419
        %v421 = vrot.slane %v414, %v420
        %v423 = vsel %vm294, %v421, inf
        %424 = vst.msk [vmem:[%s259] sm:$0x3] %vm403, %v423
        %s425 = sand.u32 %s105, 1
        %s426 = scalar_lea.sflag [#allocation4], %s425
        %s427 = sand.u32 %s105, 1
        %s428 = smul.addr %s427, 2
        %s429 = scalar_lea.vmem [#allocation7], %s428
        %s430 = sand.u32 %s133, 1
        %s431 = scalar_lea.sflag [#allocation9], %s430
        %s432 = sand.u32 %s133, 1
        %s433 = smul.addr %s432, 2
        %s434 = scalar_lea.vmem [#allocation8], %s433
        // Predicated region
        $region37: #{tpu_custom_call.1} parent=27 // pred_check
          %p435 = pneg %p115
        $region38: #{tpu_custom_call.1} parent=27 // pred_check_branch
          %437 = sbr.rel (%p435) target = $region40
        $region39: #{tpu_custom_call.1} parent=27 // pred_region
          %s438 = smul.u32 2, %s32
          %s440 = ssub.s32 32, 32
          %441 = vsyncadd %s426, %s440
          %s442 = smul.addr %s31, 2
          %s443 = sadd.s32 %s438, %s442
          %s444 = smul.addr %s443, 16
          %s445 = scalar_lea.hbm %s2, %s444
          %s447 = sshll.u32 %s429, 4
          %s448 = int_to_ptr.vmem [resolvable:$true] %s447
          %450 = dma.vmem_to_hbm [thread:$0]  %s448, 32, %s445, %s426
        $region40: #{tpu_custom_call.1} parent=27 // pred_fallthru
          _
        // Predicated region
        $region41: #{tpu_custom_call.1} parent=27 // pred_check
          %p451 = pneg %p143
        $region42: #{tpu_custom_call.1} parent=27 // pred_check_branch
          %453 = sbr.rel (%p451) target = $region44
        $region43: #{tpu_custom_call.1} parent=27 // pred_region
          %s454 = smul.u32 2, %s32
          %s456 = ssub.s32 32, 32
          %457 = vsyncadd %s431, %s456
          %s458 = smul.addr %s31, 2
          %s459 = sadd.s32 %s454, %s458
          %s460 = smul.addr %s459, 16
          %s461 = scalar_lea.hbm %s3, %s460
          %s463 = sshll.u32 %s434, 4
          %s464 = int_to_ptr.vmem [resolvable:$true] %s463
          %466 = dma.vmem_to_hbm [thread:$0]  %s464, 32, %s461, %s431
        $region44: #{tpu_custom_call.1} parent=27 // pred_fallthru
          _
      $region28: #{tpu_custom_call.1} parent=5 // pred_fallthru
        _
      %p467 = scmp.le.s32.totalorder 2, %s22
      // Predicated region
      $region45: #{tpu_custom_call.1} parent=5 // pred_check
        %p468 = pneg %p467
      $region46: #{tpu_custom_call.1} parent=5 // pred_check_branch
        %470 = sbr.rel (%p468) target = $region48
      $region47: #{tpu_custom_call.1} parent=5 // pred_region
        %s471 = ssub.s32 %s22, 2
        // Predicated region
        $region49: #{tpu_custom_call.1} parent=47 // pred_check
          %p472 = pneg %p121
        $region50: #{tpu_custom_call.1} parent=47 // pred_check_branch
          %474 = sbr.rel (%p472) target = $region52
        $region51: #{tpu_custom_call.1} parent=47 // pred_region
          %s475 = sand.u32 %s106, 1
          %s476 = scalar_lea.sflag [#allocation4], %s475
          %s477 = sand.u32 %s106, 1
          %s478 = smul.addr %s477, 2
          %s479 = scalar_lea.vmem [#allocation7], %s478
          %480 = dma.done %s476, 32
        $region52: #{tpu_custom_call.1} parent=47 // pred_fallthru
          _
        // Predicated region
        $region53: #{tpu_custom_call.1} parent=47 // pred_check
          %p481 = pneg %p149
        $region54: #{tpu_custom_call.1} parent=47 // pred_check_branch
          %483 = sbr.rel (%p481) target = $region56
        $region55: #{tpu_custom_call.1} parent=47 // pred_region
          %s484 = sand.u32 %s134, 1
          %s485 = scalar_lea.sflag [#allocation9], %s484
          %s486 = sand.u32 %s134, 1
          %s487 = smul.addr %s486, 2
          %s488 = scalar_lea.vmem [#allocation8], %s487
          %489 = dma.done %s485, 32
        $region56: #{tpu_custom_call.1} parent=47 // pred_fallthru
          _
      $region48: #{tpu_custom_call.1} parent=5 // pred_fallthru
        _
    $region6: #{tpu_custom_call.1} parent=1 // loop_footer
      %s26 = sadd.s32 1, %s22
    $region7: #{tpu_custom_call.1} parent=1 // loop_footer_branch
      %21 = sbr.rel target = $region3
    $region8: #{tpu_custom_call.1} parent=1 // loop_exit
      _
    %490 = vsyncpa [#allocation3], 1
    %s491 = scalar_lea.sflag [#allocation3], 1
    %492 = vsyncpa %s491, 1
    %493 = vsyncpa [#allocation6], 1
    %s494 = scalar_lea.sflag [#allocation6], 1
    %495 = vsyncpa %s494, 1
    %496 = vsyncpa [#allocation4], 1
    %s497 = scalar_lea.sflag [#allocation4], 1
    %498 = vsyncpa %s497, 1
    %499 = vsyncpa [#allocation9], 1
    %s500 = scalar_lea.sflag [#allocation9], 1
    %501 = vsyncpa %s500, 1

</llo_original>
